<compile_context>
chip_gen: v7x
topology: tpu7x:2x2x1
jax: 0.10.0
libtpu: 0.0.40
codegen_flags: <defaults>
</compile_context>

<pallas_src>
import functools

import jax
import jax.numpy as jnp
from jax.experimental import pallas as pl
from jax.experimental.pallas import tpu as pltpu


_LANE = 128      # lane width (last dim)
_SUBLANE = 8     # f32 sublane height (second-to-last dim)


def _round_up(x, m):
    return ((x + m - 1) // m) * m


def _pad_gran(d):
    """Feature-pad granularity: 256 (native v6e/v7x MXU tile) once the true dim
    is large enough, else 128 lanes."""
    return 256 if d >= 256 else _LANE


@functools.lru_cache(maxsize=1)
def _vmem_capacity_bytes():
    """Physical VMEM of the local TPU generation (conservative fallback)."""
    try:
        return int(pltpu.get_tpu_info().vmem_capacity_bytes)
    except Exception:
        return 64 * 1024 * 1024   # v7x per-TensorCore VMEM (smallest current gen)


# ---------------------------------------------------------------------------
# Fused kernel: whole MLP for one batch tile (fast path)
# ---------------------------------------------------------------------------
def _make_fused_mlp_kernel(num_layers):
    """Kernel over refs: [x, (w, scale, shift) * num_layers, o].

    Every layer computes y = scale * (h @ w) + shift; all but the last apply
    tanh. For the last layer scale == 1 and shift == bias, so this is exactly
    Linear -> BN(eval) -> tanh repeated, then the final Linear."""

    def kernel(*refs):
        x_ref = refs[0]
        o_ref = refs[-1]
        h = x_ref[...]                                   # f32
        for l in range(num_layers):
            w = refs[1 + 3 * l][...]                     # bf16, VMEM-resident
            scale = refs[2 + 3 * l][...]                 # f32 (1, N)
            shift = refs[3 + 3 * l][...]                 # f32 (1, N)
            y = jnp.dot(h.astype(jnp.bfloat16), w,
                        preferred_element_type=jnp.float32)
            y = y * scale + shift
            h = jnp.tanh(y) if l < num_layers - 1 else y
        o_ref[...] = h.astype(o_ref.dtype)

    return kernel


def _choose_batch_tile(m_pad, in_ch, n_out_pad, max_hidden_pad,
                       weight_bytes, tile_budget):
    """Pick the batch tile from a generation-aware VMEM budget.

    Counts the double-buffered x / out tiles (f32) plus a few live hidden
    activations per row (f32 + a bf16 copy), and the single-buffered resident
    weights (pl.Buffered(1))."""
    per_row = 4 * (2 * in_ch + 2 * n_out_pad + 3 * max_hidden_pad)
    avail = tile_budget - weight_bytes          # weights single-buffered
    tm = max(_SUBLANE, min(2048, avail // per_row))
    # Keep the batch grid at >= 2 steps so both v7x TensorCores get work and
    # the pipeline has something to overlap.
    if m_pad > _SUBLANE:
        tm = min(tm, _round_up(pl.cdiv(m_pad, 2), _SUBLANE))
    tm = max(_SUBLANE, (tm // _SUBLANE) * _SUBLANE)
    tm = min(tm, m_pad)
    return int(tm)


def _fused_mlp_call(x_rows, layers, tm, out_dtype, vmem_limit):
    """Single pallas_call for the whole MLP (row-padded x, padded features)."""
    m_pad, in_ch = x_rows.shape
    n_out_pad = layers[-1]["w"].shape[1]
    num_layers = len(layers)
    grid = (pl.cdiv(m_pad, tm),)        # ragged last tile is fine (row-wise op)

    resident = lambda i: (0, 0)         # grid-invariant: never re-fetched

    flat_inputs = [x_rows]
    in_specs = [pl.BlockSpec((tm, in_ch), lambda i: (i, 0))]
    for lyr in layers:
        for arr in (lyr["w"], lyr["scale"], lyr["shift"]):
            flat_inputs.append(arr)
            in_specs.append(pl.BlockSpec(arr.shape, resident,
                                         pipeline_mode=pl.Buffered(1)))

    # Advisory cost estimate so XLA can schedule around the fused call.
    flops = 0
    transcendentals = 0
    bytes_accessed = int(x_rows.size) * x_rows.dtype.itemsize \
        + m_pad * n_out_pad * jnp.dtype(out_dtype).itemsize
    d_in = in_ch
    for l, lyr in enumerate(layers):
        d_out = lyr["w"].shape[1]
        flops += 2 * m_pad * d_in * d_out
        if l < num_layers - 1:
            transcendentals += m_pad * d_out
        bytes_accessed += sum(int(lyr[k].size) * lyr[k].dtype.itemsize
                              for k in ("w", "scale", "shift"))
        d_in = d_out

    return pl.pallas_call(
        _make_fused_mlp_kernel(num_layers),
        out_shape=jax.ShapeDtypeStruct((m_pad, n_out_pad), out_dtype),
        grid_spec=pltpu.PrefetchScalarGridSpec(
            num_scalar_prefetch=0,
            grid=grid,
            in_specs=in_specs,
            out_specs=pl.BlockSpec((tm, n_out_pad), lambda i: (i, 0)),
        ),
        compiler_params=pltpu.CompilerParams(
            # Batch tiles are independent -> shard across TCs on v7x megacore.
            dimension_semantics=("parallel",),
            vmem_limit_bytes=vmem_limit,
        ),
        cost_estimate=pl.CostEstimate(
            flops=int(flops),
            transcendentals=int(transcendentals),
            bytes_accessed=int(bytes_accessed),
        ),
    )(*flat_inputs)


# ---------------------------------------------------------------------------
# Fallback path: one feature-tiled pallas_call per layer (huge hidden widths)
# ---------------------------------------------------------------------------
def _make_layer_kernel(apply_tanh):
    def kernel(x_ref, w_ref, scale_ref, shift_ref, o_ref, acc_ref):
        @pl.when(pl.program_id(2) == 0)
        def _():
            acc_ref[...] = jnp.zeros_like(acc_ref)
        acc_ref[...] += jnp.dot(x_ref[...].astype(jnp.bfloat16), w_ref[...],
                                preferred_element_type=jnp.float32)

        @pl.when(pl.program_id(2) == pl.num_programs(2) - 1)
        def _():
            y = acc_ref[...] * scale_ref[...] + shift_ref[...]
            if apply_tanh:
                y = jnp.tanh(y)
            o_ref[...] = y.astype(o_ref.dtype)

    return kernel


def _pick_feature_tile(d):
    for t in (512, 256, 128):
        if d % t == 0:
            return t
    return d   # not 128-aligned: use the full dim (legal: equals array dim)


def _layer_call(x, w, scale, shift, apply_tanh, vmem_limit):
    m_pad, k_dim = x.shape
    _, n_pad = w.shape
    tm = max(_SUBLANE, (min(512, m_pad) // _SUBLANE) * _SUBLANE)
    tk = _pick_feature_tile(k_dim)
    tn = _pick_feature_tile(n_pad)
    grid = (pl.cdiv(m_pad, tm), n_pad // tn, k_dim // tk)
    return pl.pallas_call(
        _make_layer_kernel(apply_tanh),
        out_shape=jax.ShapeDtypeStruct((m_pad, n_pad), x.dtype),
        grid_spec=pltpu.PrefetchScalarGridSpec(
            num_scalar_prefetch=0,
            grid=grid,
            in_specs=[
                pl.BlockSpec((tm, tk), lambda i, j, k: (i, k)),
                pl.BlockSpec((tk, tn), lambda i, j, k: (k, j)),
                pl.BlockSpec((1, tn), lambda i, j, k: (0, j)),
                pl.BlockSpec((1, tn), lambda i, j, k: (0, j)),
            ],
            out_specs=pl.BlockSpec((tm, tn), lambda i, j, k: (i, j)),
            scratch_shapes=[pltpu.VMEM((tm, tn), jnp.float32)],
        ),
        compiler_params=pltpu.CompilerParams(
            dimension_semantics=("parallel", "parallel", "arbitrary"),
            vmem_limit_bytes=vmem_limit,
        ),
    )(x, w, scale, shift)


# ---------------------------------------------------------------------------
# Parameter construction (deterministic, mirrors the PyTorch module shapes)
# ---------------------------------------------------------------------------
def init_mlp_params(key, in_channels, hidden_channels, out_channels,
                    num_layers, dtype=jnp.float32):
    """Raw PyTorch-style params: Linear(w, b) + BatchNorm1d(gamma, beta, mean, var)."""
    dims = [in_channels] + [hidden_channels] * (num_layers - 1) + [out_channels]
    params = []
    for layer in range(num_layers):
        d_in, d_out = dims[layer], dims[layer + 1]
        key, kw, kb, kg, kbe, km, kv = jax.random.split(key, 7)
        # Linear weight stored transposed vs PyTorch: (d_in, d_out) so y = x @ W.
        w = (jax.random.normal(kw, (d_in, d_out), dtype)
             / jnp.sqrt(jnp.asarray(d_in, dtype)))
        b = 0.1 * jax.random.normal(kb, (d_out,), dtype)
        p = dict(w=w, b=b)
        if layer < num_layers - 1:
            p["gamma"] = 1.0 + 0.1 * jax.random.normal(kg, (d_out,), dtype)
            p["beta"] = 0.1 * jax.random.normal(kbe, (d_out,), dtype)
            p["mean"] = 0.1 * jax.random.normal(km, (d_out,), dtype)
            p["var"] = jnp.abs(jax.random.normal(kv, (d_out,), dtype)) + 0.5
        params.append(p)
    return params


def prepare_mlp_params(params, eps=1e-5):
    """Fold eval-mode BN + Linear bias into (scale, shift); bf16 + lane padding.

    scale*(xW + b) + shift == scale*xW + (scale*b + shift); zero padding is exact
    (padded scale/shift are 0, so padded lanes stay exactly 0 through every
    layer). The raw input feature dim of layer 0 is NOT padded; every other
    layer's K dim matches the previous layer's padded output width."""
    kparams = []
    n = len(params)
    prev_pad = None   # padded output width of the previous layer
    for i, p in enumerate(params):
        d_in, d_out = p["w"].shape
        d_in_pad = d_in if prev_pad is None else prev_pad
        d_out_pad = _round_up(d_out, _pad_gran(d_out))

        # MXU-friendly bf16 weights (f32 accumulation happens in the kernel).
        w = jnp.zeros((d_in_pad, d_out_pad), jnp.bfloat16)
        w = w.at[:d_in, :d_out].set(p["w"].astype(jnp.bfloat16))

        if i < n - 1:
            scale = p["gamma"] / jnp.sqrt(p["var"] + eps)
            shift = p["beta"] - p["mean"] * scale + scale * p["b"]   # bias folded
        else:
            scale = jnp.ones_like(p["b"])
            shift = p["b"]
        scale_p = jnp.zeros((1, d_out_pad), jnp.float32)
        scale_p = scale_p.at[0, :d_out].set(scale.astype(jnp.float32))
        shift_p = jnp.zeros((1, d_out_pad), jnp.float32)
        shift_p = shift_p.at[0, :d_out].set(shift.astype(jnp.float32))

        kparams.append(dict(w=w, scale=scale_p, shift=shift_p))
        prev_pad = d_out_pad
    return kparams


# ---------------------------------------------------------------------------
# Forward pass
# ---------------------------------------------------------------------------
@functools.partial(jax.jit, static_argnames=("out_channels",))
def mlp_forward(x, kparams, *, out_channels):
    # TODO(synk): dropout is identity here (p=0.0, eval mode), so no RNG path.
    batch, in_ch = x.shape
    n_out_pad = kparams[-1]["w"].shape[1]
    max_hidden_pad = max(l["w"].shape[1] for l in kparams)
    weight_bytes = sum(int(v.size) * v.dtype.itemsize
                       for lyr in kparams for v in lyr.values())

    vmem = _vmem_capacity_bytes()
    tile_budget = int(0.55 * vmem)          # activations + resident weights
    vmem_limit = int(0.75 * vmem)           # explicit scoped-VMEM limit

    # Pad only the batch rows to the 8-row sublane (no feature padding of x).
    m_pad = _round_up(batch, _SUBLANE)
    x_rows = x if m_pad == batch else jnp.pad(x, ((0, m_pad - batch), (0, 0)))

    if weight_bytes <= tile_budget // 2:
        # Fast path: everything resident, whole MLP in one pallas_call.
        tm = _choose_batch_tile(m_pad, in_ch, n_out_pad, max_hidden_pad,
                                weight_bytes, tile_budget)
        out_pad = _fused_mlp_call(x_rows, kparams, tm, x.dtype, vmem_limit)
    else:
        # Resident weights would crowd VMEM (e.g. wide hidden layers on v7x):
        # degrade to one feature-tiled pallas_call per layer (P1 + P3).
        h = x_rows
        n_layers = len(kparams)
        for i, lyr in enumerate(kparams):
            h = _layer_call(h, lyr["w"], lyr["scale"], lyr["shift"],
                            apply_tanh=(i < n_layers - 1),
                            vmem_limit=vmem_limit)
        out_pad = h

    return out_pad[:batch, :out_channels]


# ---------------------------------------------------------------------------
# Demo / smoke test
# ---------------------------------------------------------------------------
if __name__ == "__main__":
    key = jax.random.PRNGKey(0)
    k_x, k_p = jax.random.split(key)

    batch = 8
    in_channels = 16
    hidden_channels = 32
    out_channels = 8
    num_layers = 3   # Linear(16,32)+BN+tanh, Linear(32,32)+BN+tanh, Linear(32,8)

    x = jax.random.normal(k_x, (batch, in_channels), jnp.float32)
    raw_params = init_mlp_params(k_p, in_channels, hidden_channels,
                                 out_channels, num_layers)
    kparams = prepare_mlp_params(raw_params)

    out = mlp_forward(x, kparams, out_channels=out_channels)
    out = jax.block_until_ready(out)

    # Pure-JAX f32 reference of the PyTorch eval-mode forward:
    #   Linear -> BatchNorm1d(running stats) -> tanh, repeated, then final Linear.
    eps = 1e-5
    ref = x
    for i, p in enumerate(raw_params):
        ref = ref @ p["w"] + p["b"]
        if i < num_layers - 1:
            ref = (ref - p["mean"]) / jnp.sqrt(p["var"] + eps) * p["gamma"] + p["beta"]
            ref = jnp.tanh(ref)

    assert out.shape == (batch, out_channels)
    err = float(jnp.max(jnp.abs(out - ref)))
    # bf16 MXU inputs with f32 accumulation: loose tolerance vs the f32 reference.
    assert jnp.allclose(out, ref, atol=5e-2, rtol=5e-2), f"max abs err = {err}"

    print("KERNEL_OK")
</pallas_src>

<mosaic_0001>
module attributes {stable_mosaic.version = 11 : i64} {
  func.func @kernel(%arg0: i32, %arg1: memref<8x16xf32, #tpu.memory_space<vmem>>, %arg2: memref<16x128xbf16, #tpu.memory_space<vmem>>, %arg3: memref<1x128xf32, #tpu.memory_space<vmem>>, %arg4: memref<1x128xf32, #tpu.memory_space<vmem>>, %arg5: memref<128x128xbf16, #tpu.memory_space<vmem>>, %arg6: memref<1x128xf32, #tpu.memory_space<vmem>>, %arg7: memref<1x128xf32, #tpu.memory_space<vmem>>, %arg8: memref<128x128xbf16, #tpu.memory_space<vmem>>, %arg9: memref<1x128xf32, #tpu.memory_space<vmem>>, %arg10: memref<1x128xf32, #tpu.memory_space<vmem>>, %arg11: memref<8x128xf32, #tpu.memory_space<vmem>>) attributes {dimension_semantics = [#tpu.dimension_semantics<parallel>], iteration_bounds = array<i64: 1>, scalar_prefetch = 0 : i64, scratch_operands = 0 : i64, tpu.core_type = #tpu.core_type<tc>, window_params = [{transform_indices = @transform_0, window_bounds = array<i64: 8, 16>}, {pipeline_mode = #tpu.pipeline_mode<synchronous>, transform_indices = @transform_1, window_bounds = array<i64: 16, 128>}, {pipeline_mode = #tpu.pipeline_mode<synchronous>, transform_indices = @transform_2, window_bounds = array<i64: 1, 128>}, {pipeline_mode = #tpu.pipeline_mode<synchronous>, transform_indices = @transform_3, window_bounds = array<i64: 1, 128>}, {pipeline_mode = #tpu.pipeline_mode<synchronous>, transform_indices = @transform_4, window_bounds = array<i64: 128, 128>}, {pipeline_mode = #tpu.pipeline_mode<synchronous>, transform_indices = @transform_5, window_bounds = array<i64: 1, 128>}, {pipeline_mode = #tpu.pipeline_mode<synchronous>, transform_indices = @transform_6, window_bounds = array<i64: 1, 128>}, {pipeline_mode = #tpu.pipeline_mode<synchronous>, transform_indices = @transform_7, window_bounds = array<i64: 128, 128>}, {pipeline_mode = #tpu.pipeline_mode<synchronous>, transform_indices = @transform_8, window_bounds = array<i64: 1, 128>}, {pipeline_mode = #tpu.pipeline_mode<synchronous>, transform_indices = @transform_9, window_bounds = array<i64: 1, 128>}, {transform_indices = @transform_10, window_bounds = array<i64: 8, 128>}]} {
    %c0 = arith.constant 0 : index
    %c0_0 = arith.constant 0 : index
    %0 = vector.load %arg1[%c0, %c0_0] : memref<8x16xf32, #tpu.memory_space<vmem>>, vector<8x16xf32>
    %c0_1 = arith.constant 0 : index
    %c0_2 = arith.constant 0 : index
    %1 = vector.load %arg2[%c0_1, %c0_2] : memref<16x128xbf16, #tpu.memory_space<vmem>>, vector<16x128xbf16>
    %c0_3 = arith.constant 0 : index
    %c0_4 = arith.constant 0 : index
    %2 = vector.load %arg3[%c0_3, %c0_4] : memref<1x128xf32, #tpu.memory_space<vmem>>, vector<1x128xf32>
    %c0_5 = arith.constant 0 : index
    %c0_6 = arith.constant 0 : index
    %3 = vector.load %arg4[%c0_5, %c0_6] : memref<1x128xf32, #tpu.memory_space<vmem>>, vector<1x128xf32>
    %4 = arith.truncf %0 : vector<8x16xf32> to vector<8x16xbf16>
    %cst = arith.constant dense<0.000000e+00> : vector<8x128xf32>
    %5 = tpu.matmul %4, %1, %cst {dimension_numbers = #tpu.dot_dimension_numbers<[1], [0], [0], [1], [0, 0, 1, 1], [], []>} : vector<8x16xbf16>, vector<16x128xbf16>, vector<8x128xf32> -> vector<8x128xf32>
    %6 = vector.broadcast %2 : vector<1x128xf32> to vector<8x128xf32>
    %7 = arith.mulf %5, %6 : vector<8x128xf32>
    %8 = vector.broadcast %3 : vector<1x128xf32> to vector<8x128xf32>
    %9 = arith.addf %7, %8 : vector<8x128xf32>
    %10 = math.tanh %9 : vector<8x128xf32>
    %c0_7 = arith.constant 0 : index
    %c0_8 = arith.constant 0 : index
    %11 = vector.load %arg5[%c0_7, %c0_8] : memref<128x128xbf16, #tpu.memory_space<vmem>>, vector<128x128xbf16>
    %c0_9 = arith.constant 0 : index
    %c0_10 = arith.constant 0 : index
    %12 = vector.load %arg6[%c0_9, %c0_10] : memref<1x128xf32, #tpu.memory_space<vmem>>, vector<1x128xf32>
    %c0_11 = arith.constant 0 : index
    %c0_12 = arith.constant 0 : index
    %13 = vector.load %arg7[%c0_11, %c0_12] : memref<1x128xf32, #tpu.memory_space<vmem>>, vector<1x128xf32>
    %14 = arith.truncf %10 : vector<8x128xf32> to vector<8x128xbf16>
    %cst_13 = arith.constant dense<0.000000e+00> : vector<8x128xf32>
    %15 = tpu.matmul %14, %11, %cst_13 {dimension_numbers = #tpu.dot_dimension_numbers<[1], [0], [0], [1], [0, 0, 1, 1], [], []>} : vector<8x128xbf16>, vector<128x128xbf16>, vector<8x128xf32> -> vector<8x128xf32>
    %16 = vector.broadcast %12 : vector<1x128xf32> to vector<8x128xf32>
    %17 = arith.mulf %15, %16 : vector<8x128xf32>
    %18 = vector.broadcast %13 : vector<1x128xf32> to vector<8x128xf32>
    %19 = arith.addf %17, %18 : vector<8x128xf32>
    %20 = math.tanh %19 : vector<8x128xf32>
    %c0_14 = arith.constant 0 : index
    %c0_15 = arith.constant 0 : index
    %21 = vector.load %arg8[%c0_14, %c0_15] : memref<128x128xbf16, #tpu.memory_space<vmem>>, vector<128x128xbf16>
    %c0_16 = arith.constant 0 : index
    %c0_17 = arith.constant 0 : index
    %22 = vector.load %arg9[%c0_16, %c0_17] : memref<1x128xf32, #tpu.memory_space<vmem>>, vector<1x128xf32>
    %c0_18 = arith.constant 0 : index
    %c0_19 = arith.constant 0 : index
    %23 = vector.load %arg10[%c0_18, %c0_19] : memref<1x128xf32, #tpu.memory_space<vmem>>, vector<1x128xf32>
    %24 = arith.truncf %20 : vector<8x128xf32> to vector<8x128xbf16>
    %cst_20 = arith.constant dense<0.000000e+00> : vector<8x128xf32>
    %25 = tpu.matmul %24, %21, %cst_20 {dimension_numbers = #tpu.dot_dimension_numbers<[1], [0], [0], [1], [0, 0, 1, 1], [], []>} : vector<8x128xbf16>, vector<128x128xbf16>, vector<8x128xf32> -> vector<8x128xf32>
    %26 = vector.broadcast %22 : vector<1x128xf32> to vector<8x128xf32>
    %27 = arith.mulf %25, %26 : vector<8x128xf32>
    %28 = vector.broadcast %23 : vector<1x128xf32> to vector<8x128xf32>
    %29 = arith.addf %27, %28 : vector<8x128xf32>
    %c0_21 = arith.constant 0 : index
    %c0_22 = arith.constant 0 : index
    %30 = vector.load %arg11[%c0_21, %c0_22] : memref<8x128xf32, #tpu.memory_space<vmem>>, vector<8x128xf32>
    tpu.vector_store %arg11[%c0_21, %c0_22], %29 {strides = array<i32>} : memref<8x128xf32, #tpu.memory_space<vmem>>, vector<8x128xf32>,
    return
  }
  func.func @transform_0(%arg0: i32) -> (i32, i32) {
    %c0_i32 = arith.constant 0 : i32
    %c0_i32_0 = arith.constant 0 : i32
    return %arg0, %c0_i32 : i32, i32
  }
  func.func @transform_1(%arg0: i32) -> (i32, i32) {
    %c0_i32 = arith.constant 0 : i32
    %c0_i32_0 = arith.constant 0 : i32
    %c0_i32_1 = arith.constant 0 : i32
    return %c0_i32, %c0_i32_0 : i32, i32
  }
  func.func @transform_2(%arg0: i32) -> (i32, i32) {
    %c0_i32 = arith.constant 0 : i32
    %c0_i32_0 = arith.constant 0 : i32
    %c0_i32_1 = arith.constant 0 : i32
    return %c0_i32, %c0_i32_0 : i32, i32
  }
  func.func @transform_3(%arg0: i32) -> (i32, i32) {
    %c0_i32 = arith.constant 0 : i32
    %c0_i32_0 = arith.constant 0 : i32
    %c0_i32_1 = arith.constant 0 : i32
    return %c0_i32, %c0_i32_0 : i32, i32
  }
  func.func @transform_4(%arg0: i32) -> (i32, i32) {
    %c0_i32 = arith.constant 0 : i32
    %c0_i32_0 = arith.constant 0 : i32
    %c0_i32_1 = arith.constant 0 : i32
    return %c0_i32, %c0_i32_0 : i32, i32
  }
  func.func @transform_5(%arg0: i32) -> (i32, i32) {
    %c0_i32 = arith.constant 0 : i32
    %c0_i32_0 = arith.constant 0 : i32
    %c0_i32_1 = arith.constant 0 : i32
    return %c0_i32, %c0_i32_0 : i32, i32
  }
  func.func @transform_6(%arg0: i32) -> (i32, i32) {
    %c0_i32 = arith.constant 0 : i32
    %c0_i32_0 = arith.constant 0 : i32
    %c0_i32_1 = arith.constant 0 : i32
    return %c0_i32, %c0_i32_0 : i32, i32
  }
  func.func @transform_7(%arg0: i32) -> (i32, i32) {
    %c0_i32 = arith.constant 0 : i32
    %c0_i32_0 = arith.constant 0 : i32
    %c0_i32_1 = arith.constant 0 : i32
    return %c0_i32, %c0_i32_0 : i32, i32
  }
  func.func @transform_8(%arg0: i32) -> (i32, i32) {
    %c0_i32 = arith.constant 0 : i32
    %c0_i32_0 = arith.constant 0 : i32
    %c0_i32_1 = arith.constant 0 : i32
    return %c0_i32, %c0_i32_0 : i32, i32
  }
  func.func @transform_9(%arg0: i32) -> (i32, i32) {
    %c0_i32 = arith.constant 0 : i32
    %c0_i32_0 = arith.constant 0 : i32
    %c0_i32_1 = arith.constant 0 : i32
    return %c0_i32, %c0_i32_0 : i32, i32
  }
  func.func @transform_10(%arg0: i32) -> (i32, i32) {
    %c0_i32 = arith.constant 0 : i32
    %c0_i32_0 = arith.constant 0 : i32
    return %arg0, %c0_i32 : i32, i32
  }
}

</mosaic_0001>

<llo_original>
// kernel: mlp_forward.1
$region0: #{mlp_forward.1}
  #allocation0 [shape = 'u32[]', space=smem, size = 0x4, offset = 0x4, fixed_abs, tag = 'smem constant byte address 0x4 - core index']
  #allocation1 [shape = 'u32[144,128]{1,0:T(1,128)}', space=vmem, size = 0x12000, scoped, tag = 'internal scratch']
  %s0 = inlined_call_operand.hbm [shape: f32[8,16], index: 0, kind: input, shape index: {}]
  %s1 = inlined_call_operand.vmem [shape: bf16[16,128], index: 1, kind: input, shape index: {}]
  %s2 = inlined_call_operand.vmem [shape: f32[1,128], index: 2, kind: input, shape index: {}]
  %s3 = inlined_call_operand.vmem [shape: f32[1,128], index: 3, kind: input, shape index: {}]
  %s4 = inlined_call_operand.hbm [shape: bf16[128,128], index: 4, kind: input, shape index: {}]
  %s5 = inlined_call_operand.vmem [shape: f32[1,128], index: 5, kind: input, shape index: {}]
  %s6 = inlined_call_operand.vmem [shape: f32[1,128], index: 6, kind: input, shape index: {}]
  %s7 = inlined_call_operand.hbm [shape: bf16[128,128], index: 7, kind: input, shape index: {}]
  %s8 = inlined_call_operand.vmem [shape: f32[1,128], index: 8, kind: input, shape index: {}]
  %s9 = inlined_call_operand.vmem [shape: f32[1,128], index: 9, kind: input, shape index: {}]
  %s10 = inlined_call_operand.hbm [shape: f32[8,128], index: 10, kind: output, shape index: {}]
  %s11 = sld [smem:[#allocation0]]
  $region62: #{mlp_forward.1} parent=0
    _
  %s13 = ssub.s32 1, %s11
  %s14 = scalar_select 0, %s13, %s11
  $region1: #{mlp_forward.1} parent=0
    #allocation2 [shape = 'u8[4096]{0}', space=vmem, size = 0x1000, scoped, tag = 'input window, operand 0, single buffered']
    #allocation3 [shape = 's32[1]{0}', space=sflag, size = 0x4, scoped, tag = 'scoped memory for mlp_forward.1']
    #allocation4 [shape = 's32[1]{0}', space=sflag, size = 0x4, scoped, tag = 'scoped memory for mlp_forward.1']
    #allocation5 [shape = 'u8[32768]{0}', space=vmem, size = 0x8000, scoped, tag = 'input window, operand 4, single buffered']
    #allocation6 [shape = 's32[1]{0}', space=sflag, size = 0x4, scoped, tag = 'scoped memory for mlp_forward.1']
    #allocation7 [shape = 'u8[32768]{0}', space=vmem, size = 0x8000, scoped, tag = 'input window, operand 7, single buffered']
    #allocation8 [shape = 'u8[4096]{0}', space=vmem, size = 0x1000, scoped, tag = 'output window, operand 0, single buffered']
    %15 = vsyncpa [#allocation3], 0
    %16 = vsyncpa [#allocation6], 0
    %17 = vsyncpa [#allocation4], 0
    // Predicated region
    $region2: #{mlp_forward.1} parent=1 // pred_check
      _
    $region3: #{mlp_forward.1} parent=1 // pred_check_branch
      %19 = sbr.rel (0) target = $region5
    $region4: #{mlp_forward.1} parent=1 // pred_region
      %s21 = ssub.s32 128, 128
      %22 = vsyncadd [#allocation3], %s21
      %s24 = sshll.u32 [#allocation2], 4
      %s25 = int_to_ptr.vmem [resolvable:$true] %s24
      %27 = dma.hbm_to_vmem [thread:$0]  %s0, 128, %s25, [#allocation3]
    $region5: #{mlp_forward.1} parent=1 // pred_fallthru
      _
    // Predicated region
    $region6: #{mlp_forward.1} parent=1 // pred_check
      _
    $region7: #{mlp_forward.1} parent=1 // pred_check_branch
      %29 = sbr.rel (0) target = $region9
    $region8: #{mlp_forward.1} parent=1 // pred_region
      _
    $region9: #{mlp_forward.1} parent=1 // pred_fallthru
      _
    // Predicated region
    $region10: #{mlp_forward.1} parent=1 // pred_check
      _
    $region11: #{mlp_forward.1} parent=1 // pred_check_branch
      %31 = sbr.rel (0) target = $region13
    $region12: #{mlp_forward.1} parent=1 // pred_region
      _
    $region13: #{mlp_forward.1} parent=1 // pred_fallthru
      _
    // Predicated region
    $region14: #{mlp_forward.1} parent=1 // pred_check
      _
    $region15: #{mlp_forward.1} parent=1 // pred_check_branch
      %33 = sbr.rel (0) target = $region17
    $region16: #{mlp_forward.1} parent=1 // pred_region
      _
    $region17: #{mlp_forward.1} parent=1 // pred_fallthru
      _
    // Predicated region
    $region18: #{mlp_forward.1} parent=1 // pred_check
      _
    $region19: #{mlp_forward.1} parent=1 // pred_check_branch
      %35 = sbr.rel (0) target = $region21
    $region20: #{mlp_forward.1} parent=1 // pred_region
      %s37 = ssub.s32 1024, 1024
      %38 = vsyncadd [#allocation6], %s37
      %s39 = sshll.u32 [#allocation5], 4
      %s40 = int_to_ptr.vmem [resolvable:$true] %s39
      %45 = dma.hbm_to_vmem [thread:$0]  %s4, 1024, %s40, [#allocation6], 64, 64, 4
    $region21: #{mlp_forward.1} parent=1 // pred_fallthru
      _
    // Predicated region
    $region22: #{mlp_forward.1} parent=1 // pred_check
      _
    $region23: #{mlp_forward.1} parent=1 // pred_check_branch
      %47 = sbr.rel (0) target = $region25
    $region24: #{mlp_forward.1} parent=1 // pred_region
      _
    $region25: #{mlp_forward.1} parent=1 // pred_fallthru
      _
    // Predicated region
    $region26: #{mlp_forward.1} parent=1 // pred_check
      _
    $region27: #{mlp_forward.1} parent=1 // pred_check_branch
      %49 = sbr.rel (0) target = $region29
    $region28: #{mlp_forward.1} parent=1 // pred_region
      _
    $region29: #{mlp_forward.1} parent=1 // pred_fallthru
      _
    // Predicated region
    $region30: #{mlp_forward.1} parent=1 // pred_check
      _
    $region31: #{mlp_forward.1} parent=1 // pred_check_branch
      %51 = sbr.rel (0) target = $region33
    $region32: #{mlp_forward.1} parent=1 // pred_region
      %s53 = ssub.s32 1024, 1024
      %54 = vsyncadd [#allocation6], %s53
      %s55 = sshll.u32 [#allocation7], 4
      %s56 = int_to_ptr.vmem [resolvable:$true] %s55
      %61 = dma.hbm_to_vmem [thread:$0]  %s7, 1024, %s56, [#allocation6], 64, 64, 4
    $region33: #{mlp_forward.1} parent=1 // pred_fallthru
      _
    // Predicated region
    $region34: #{mlp_forward.1} parent=1 // pred_check
      _
    $region35: #{mlp_forward.1} parent=1 // pred_check_branch
      %63 = sbr.rel (0) target = $region37
    $region36: #{mlp_forward.1} parent=1 // pred_region
      _
    $region37: #{mlp_forward.1} parent=1 // pred_fallthru
      _
    // Predicated region
    $region38: #{mlp_forward.1} parent=1 // pred_check
      _
    $region39: #{mlp_forward.1} parent=1 // pred_check_branch
      %65 = sbr.rel (0) target = $region41
    $region40: #{mlp_forward.1} parent=1 // pred_region
      _
    $region41: #{mlp_forward.1} parent=1 // pred_fallthru
      _
    // Predicated region
    $region42: #{mlp_forward.1} parent=1 // pred_check
      _
    $region43: #{mlp_forward.1} parent=1 // pred_check_branch
      %67 = sbr.rel (0) target = $region45
    $region44: #{mlp_forward.1} parent=1 // pred_region
      %68 = dma.done [#allocation3], 128
    $region45: #{mlp_forward.1} parent=1 // pred_fallthru
      _
    // Predicated region
    $region46: #{mlp_forward.1} parent=1 // pred_check
      _
    $region47: #{mlp_forward.1} parent=1 // pred_check_branch
      %70 = sbr.rel (0) target = $region49
    $region48: #{mlp_forward.1} parent=1 // pred_region
      %71 = dma.done [#allocation6], 1024
    $region49: #{mlp_forward.1} parent=1 // pred_fallthru
      _
    // Predicated region
    $region50: #{mlp_forward.1} parent=1 // pred_check
      _
    $region51: #{mlp_forward.1} parent=1 // pred_check_branch
      %73 = sbr.rel (0) target = $region53
    $region52: #{mlp_forward.1} parent=1 // pred_region
      %74 = dma.done [#allocation6], 1024
    $region53: #{mlp_forward.1} parent=1 // pred_fallthru
      _
    %v76 = vld [vmem:[#allocation2] sm:$0xff]
    %v77 = vld [vmem:[%s1] sm:$0xf]
    %v78 = vld [vmem:[%s1 + $0x4] sm:$0xf]
    %v79 = vld [vmem:[%s2] sm:$0x1]
    %v80 = vld [vmem:[%s3] sm:$0x1]
    %v81 = vpack.c.bf16 %v76, %v76
    %v84 = vunpack.c.l.b16 %v77
    %v85 = vunpack.c.l.b16 %v78
    %v86 = vpack.c.b16 %v85, %v84
    %vm88 = vcmask 130048
    %v90 = vsel %vm88, %v81, 0
    %92 = vmatprep.subr.bf16.mxu0 0
    %93 = vmatpush1.bf16.msra.mxu0 %v86
    %94 = vmatprep.subr.bf16.mxu0 0
    %95 = vmatpush1.bf16.msra.mxu0 0
    %96 = vmatprep.subr.bf16.mxu0 0
    %97 = vmatpush1.bf16.msra.mxu0 0
    %98 = vmatprep.subr.bf16.mxu0 0
    %99 = vmatpush1.bf16.msra.mxu0 0
    %100 = vmatprep.subr.bf16.mxu0 0
    %101 = vmatpush1.bf16.msra.mxu0 0
    %102 = vmatprep.subr.bf16.mxu0 0
    %103 = vmatpush1.bf16.msra.mxu0 0
    %104 = vmatprep.subr.bf16.mxu0 0
    %105 = vmatpush1.bf16.msra.mxu0 0
    %106 = vmatprep.subr.bf16.mxu0 0
    %107 = vmatpush1.bf16.msra.mxu0 0
    %108 = vmatprep.subr.bf16.mxu0 0
    %109 = vmatpush1.bf16.msra.mxu0 0
    %110 = vmatprep.subr.bf16.mxu0 0
    %111 = vmatpush1.bf16.msra.mxu0 0
    %112 = vmatprep.subr.bf16.mxu0 0
    %113 = vmatpush1.bf16.msra.mxu0 0
    %114 = vmatprep.subr.bf16.mxu0 0
    %115 = vmatpush1.bf16.msra.mxu0 0
    %116 = vmatprep.subr.bf16.mxu0 0
    %117 = vmatpush1.bf16.msra.mxu0 0
    %118 = vmatprep.subr.bf16.mxu0 0
    %119 = vmatpush1.bf16.msra.mxu0 0
    %120 = vmatprep.subr.bf16.mxu0 0
    %121 = vmatpush1.bf16.msra.mxu0 0
    %122 = vmatprep.subr.bf16.mxu0 0
    %123 = vmatpush1.bf16.msra.mxu0 0
    %124 = vmatprep.mubr.bf16.mxu0 0
    %125 = vmatmul.mubr.bf16.gmra.mrb[0].mxu0 %v90
    %v126 = vpop.f32.mrb[0].mxu0
    %v127 = vadd.f32 0.0, %v126
    %v128 = vpop.f32.mrb[0].mxu0
    %v129 = vpop.f32.mrb[0].mxu0
    %v130 = vpop.f32.mrb[0].mxu0
    %131 = vdwg.mxu0
    %v133 = vlaneseq
    %v134 = vshrl.u32 %v133, 7
    %v135 = vsub.s32 0, %v134
    %v136 = vrot.slane %v79, %v135
    %v138 = vmul.f32 %v127, %v136
    %v140 = vlaneseq
    %v141 = vshrl.u32 %v140, 7
    %v142 = vsub.s32 0, %v141
    %v143 = vrot.slane %v80, %v142
    %v145 = vadd.f32 %v138, %v143
    %v146 = vtanh.pop %v145
    %v147 = vld [vmem:[#allocation5] sm:$0xf]
    %v148 = vld [vmem:[#allocation5 + $0x4] sm:$0xf]
    %v149 = vld [vmem:[#allocation5 + $0x8] sm:$0xf]
    %v150 = vld [vmem:[#allocation5 + $0xc] sm:$0xf]
    %v151 = vld [vmem:[#allocation5 + $0x10] sm:$0xf]
    %v152 = vld [vmem:[#allocation5 + $0x14] sm:$0xf]
    %v153 = vld [vmem:[#allocation5 + $0x18] sm:$0xf]
    %v154 = vld [vmem:[#allocation5 + $0x1c] sm:$0xf]
    %v155 = vld [vmem:[#allocation5 + $0x20] sm:$0xf]
    %v156 = vld [vmem:[#allocation5 + $0x24] sm:$0xf]
    %v157 = vld [vmem:[#allocation5 + $0x28] sm:$0xf]
    %v158 = vld [vmem:[#allocation5 + $0x2c] sm:$0xf]
    %v159 = vld [vmem:[#allocation5 + $0x30] sm:$0xf]
    %v160 = vld [vmem:[#allocation5 + $0x34] sm:$0xf]
    %v161 = vld [vmem:[#allocation5 + $0x38] sm:$0xf]
    %v162 = vld [vmem:[#allocation5 + $0x3c] sm:$0xf]
    %v163 = vld [vmem:[%s5] sm:$0x1]
    %v164 = vld [vmem:[%s6] sm:$0x1]
    %v165 = vpack.c.bf16 %v146, %v146
    %v182 = vunpack.c.l.b16 %v147
    %v183 = vunpack.c.l.b16 %v148
    %v184 = vunpack.c.l.b16 %v149
    %v185 = vunpack.c.l.b16 %v150
    %v186 = vunpack.c.l.b16 %v151
    %v187 = vunpack.c.l.b16 %v152
    %v188 = vunpack.c.l.b16 %v153
    %v189 = vunpack.c.l.b16 %v154
    %v190 = vunpack.c.l.b16 %v155
    %v191 = vunpack.c.l.b16 %v156
    %v192 = vunpack.c.l.b16 %v157
    %v193 = vunpack.c.l.b16 %v158
    %v194 = vunpack.c.l.b16 %v159
    %v195 = vunpack.c.l.b16 %v160
    %v196 = vunpack.c.l.b16 %v161
    %v197 = vunpack.c.l.b16 %v162
    %v198 = vpack.c.b16 %v183, %v182
    %v199 = vpack.c.b16 %v185, %v184
    %v200 = vpack.c.b16 %v187, %v186
    %v201 = vpack.c.b16 %v189, %v188
    %v202 = vpack.c.b16 %v191, %v190
    %v203 = vpack.c.b16 %v193, %v192
    %v204 = vpack.c.b16 %v195, %v194
    %v205 = vpack.c.b16 %v197, %v196
    %214 = vmatprep.subr.bf16.mxu0 0
    %215 = vmatpush1.bf16.msra.mxu0 %v198
    %216 = vmatprep.subr.bf16.mxu0 0
    %217 = vmatpush1.bf16.msra.mxu0 %v199
    %218 = vmatprep.subr.bf16.mxu0 0
    %219 = vmatpush1.bf16.msra.mxu0 %v200
    %220 = vmatprep.subr.bf16.mxu0 0
    %221 = vmatpush1.bf16.msra.mxu0 %v201
    %222 = vmatprep.subr.bf16.mxu0 0
    %223 = vmatpush1.bf16.msra.mxu0 %v202
    %224 = vmatprep.subr.bf16.mxu0 0
    %225 = vmatpush1.bf16.msra.mxu0 %v203
    %226 = vmatprep.subr.bf16.mxu0 0
    %227 = vmatpush1.bf16.msra.mxu0 %v204
    %228 = vmatprep.subr.bf16.mxu0 0
    %229 = vmatpush1.bf16.msra.mxu0 %v205
    %230 = vmatprep.subr.bf16.mxu0 0
    %231 = vmatpush1.bf16.msra.mxu0 0
    %232 = vmatprep.subr.bf16.mxu0 0
    %233 = vmatpush1.bf16.msra.mxu0 0
    %234 = vmatprep.subr.bf16.mxu0 0
    %235 = vmatpush1.bf16.msra.mxu0 0
    %236 = vmatprep.subr.bf16.mxu0 0
    %237 = vmatpush1.bf16.msra.mxu0 0
    %238 = vmatprep.subr.bf16.mxu0 0
    %239 = vmatpush1.bf16.msra.mxu0 0
    %240 = vmatprep.subr.bf16.mxu0 0
    %241 = vmatpush1.bf16.msra.mxu0 0
    %242 = vmatprep.subr.bf16.mxu0 0
    %243 = vmatpush1.bf16.msra.mxu0 0
    %244 = vmatprep.subr.bf16.mxu0 0
    %245 = vmatpush1.bf16.msra.mxu0 0
    %246 = vmatprep.mubr.bf16.mxu0 0
    %247 = vmatmul.mubr.bf16.gmra.mrb[0].mxu0 %v165
    %v248 = vpop.f32.mrb[0].mxu0
    %v249 = vadd.f32 0.0, %v248
    %v250 = vpop.f32.mrb[0].mxu0
    %v251 = vpop.f32.mrb[0].mxu0
    %v252 = vpop.f32.mrb[0].mxu0
    %253 = vdwg.mxu0
    %v255 = vlaneseq
    %v256 = vshrl.u32 %v255, 7
    %v257 = vsub.s32 0, %v256
    %v258 = vrot.slane %v163, %v257
    %v260 = vmul.f32 %v249, %v258
    %v262 = vlaneseq
    %v263 = vshrl.u32 %v262, 7
    %v264 = vsub.s32 0, %v263
    %v265 = vrot.slane %v164, %v264
    %v267 = vadd.f32 %v260, %v265
    %v268 = vtanh.pop %v267
    %v269 = vld [vmem:[#allocation7] sm:$0xf]
    %v270 = vld [vmem:[#allocation7 + $0x4] sm:$0xf]
    %v271 = vld [vmem:[#allocation7 + $0x8] sm:$0xf]
    %v272 = vld [vmem:[#allocation7 + $0xc] sm:$0xf]
    %v273 = vld [vmem:[#allocation7 + $0x10] sm:$0xf]
    %v274 = vld [vmem:[#allocation7 + $0x14] sm:$0xf]
    %v275 = vld [vmem:[#allocation7 + $0x18] sm:$0xf]
    %v276 = vld [vmem:[#allocation7 + $0x1c] sm:$0xf]
    %v277 = vld [vmem:[#allocation7 + $0x20] sm:$0xf]
    %v278 = vld [vmem:[#allocation7 + $0x24] sm:$0xf]
    %v279 = vld [vmem:[#allocation7 + $0x28] sm:$0xf]
    %v280 = vld [vmem:[#allocation7 + $0x2c] sm:$0xf]
    %v281 = vld [vmem:[#allocation7 + $0x30] sm:$0xf]
    %v282 = vld [vmem:[#allocation7 + $0x34] sm:$0xf]
    %v283 = vld [vmem:[#allocation7 + $0x38] sm:$0xf]
    %v284 = vld [vmem:[#allocation7 + $0x3c] sm:$0xf]
    %v285 = vld [vmem:[%s8] sm:$0x1]
    %v286 = vld [vmem:[%s9] sm:$0x1]
    %v287 = vpack.c.bf16 %v268, %v268
    %v304 = vunpack.c.l.b16 %v269
    %v305 = vunpack.c.l.b16 %v270
    %v306 = vunpack.c.l.b16 %v271
    %v307 = vunpack.c.l.b16 %v272
    %v308 = vunpack.c.l.b16 %v273
    %v309 = vunpack.c.l.b16 %v274
    %v310 = vunpack.c.l.b16 %v275
    %v311 = vunpack.c.l.b16 %v276
    %v312 = vunpack.c.l.b16 %v277
    %v313 = vunpack.c.l.b16 %v278
    %v314 = vunpack.c.l.b16 %v279
    %v315 = vunpack.c.l.b16 %v280
    %v316 = vunpack.c.l.b16 %v281
    %v317 = vunpack.c.l.b16 %v282
    %v318 = vunpack.c.l.b16 %v283
    %v319 = vunpack.c.l.b16 %v284
    %v320 = vpack.c.b16 %v305, %v304
    %v321 = vpack.c.b16 %v307, %v306
    %v322 = vpack.c.b16 %v309, %v308
    %v323 = vpack.c.b16 %v311, %v310
    %v324 = vpack.c.b16 %v313, %v312
    %v325 = vpack.c.b16 %v315, %v314
    %v326 = vpack.c.b16 %v317, %v316
    %v327 = vpack.c.b16 %v319, %v318
    %336 = vmatprep.subr.bf16.mxu0 0
    %337 = vmatpush1.bf16.msra.mxu0 %v320
    %338 = vmatprep.subr.bf16.mxu0 0
    %339 = vmatpush1.bf16.msra.mxu0 %v321
    %340 = vmatprep.subr.bf16.mxu0 0
    %341 = vmatpush1.bf16.msra.mxu0 %v322
    %342 = vmatprep.subr.bf16.mxu0 0
    %343 = vmatpush1.bf16.msra.mxu0 %v323
    %344 = vmatprep.subr.bf16.mxu0 0
    %345 = vmatpush1.bf16.msra.mxu0 %v324
    %346 = vmatprep.subr.bf16.mxu0 0
    %347 = vmatpush1.bf16.msra.mxu0 %v325
    %348 = vmatprep.subr.bf16.mxu0 0
    %349 = vmatpush1.bf16.msra.mxu0 %v326
    %350 = vmatprep.subr.bf16.mxu0 0
    %351 = vmatpush1.bf16.msra.mxu0 %v327
    %352 = vmatprep.subr.bf16.mxu0 0
    %353 = vmatpush1.bf16.msra.mxu0 0
    %354 = vmatprep.subr.bf16.mxu0 0
    %355 = vmatpush1.bf16.msra.mxu0 0
    %356 = vmatprep.subr.bf16.mxu0 0
    %357 = vmatpush1.bf16.msra.mxu0 0
    %358 = vmatprep.subr.bf16.mxu0 0
    %359 = vmatpush1.bf16.msra.mxu0 0
    %360 = vmatprep.subr.bf16.mxu0 0
    %361 = vmatpush1.bf16.msra.mxu0 0
    %362 = vmatprep.subr.bf16.mxu0 0
    %363 = vmatpush1.bf16.msra.mxu0 0
    %364 = vmatprep.subr.bf16.mxu0 0
    %365 = vmatpush1.bf16.msra.mxu0 0
    %366 = vmatprep.subr.bf16.mxu0 0
    %367 = vmatpush1.bf16.msra.mxu0 0
    %368 = vmatprep.mubr.bf16.mxu0 0
    %369 = vmatmul.mubr.bf16.gmra.mrb[0].mxu0 %v287
    %v370 = vpop.f32.mrb[0].mxu0
    %v371 = vadd.f32 0.0, %v370
    %v372 = vpop.f32.mrb[0].mxu0
    %v373 = vpop.f32.mrb[0].mxu0
    %v374 = vpop.f32.mrb[0].mxu0
    %375 = vdwg.mxu0
    %v377 = vlaneseq
    %v378 = vshrl.u32 %v377, 7
    %v379 = vsub.s32 0, %v378
    %v380 = vrot.slane %v285, %v379
    %v382 = vmul.f32 %v371, %v380
    %v384 = vlaneseq
    %v385 = vshrl.u32 %v384, 7
    %v386 = vsub.s32 0, %v385
    %v387 = vrot.slane %v286, %v386
    %v389 = vadd.f32 %v382, %v387
    %390 = vst [vmem:[#allocation8] sm:$0xff] %v389
    // Predicated region
    $region54: #{mlp_forward.1} parent=1 // pred_check
      _
    $region55: #{mlp_forward.1} parent=1 // pred_check_branch
      %392 = sbr.rel (0) target = $region57
    $region56: #{mlp_forward.1} parent=1 // pred_region
      %s394 = ssub.s32 128, 128
      %395 = vsyncadd [#allocation4], %s394
      %s397 = sshll.u32 [#allocation8], 4
      %s398 = int_to_ptr.vmem [resolvable:$true] %s397
      %400 = dma.vmem_to_hbm [thread:$0]  %s398, 128, %s10, [#allocation4]
    $region57: #{mlp_forward.1} parent=1 // pred_fallthru
      _
    // Predicated region
    $region58: #{mlp_forward.1} parent=1 // pred_check
      _
    $region59: #{mlp_forward.1} parent=1 // pred_check_branch
      %402 = sbr.rel (0) target = $region61
    $region60: #{mlp_forward.1} parent=1 // pred_region
      %403 = dma.done [#allocation4], 128
    $region61: #{mlp_forward.1} parent=1 // pred_fallthru
      _
    %404 = vsyncpa [#allocation3], 1
    %405 = vsyncpa [#allocation6], 1
    %406 = vsyncpa [#allocation4], 1

</llo_original>
